<compile_context>
chip_gen: v5e
topology: v5e:2x2
jax: 0.10.0
libtpu: 0.0.40
codegen_flags: <defaults>
</compile_context>

<pallas_src>
import functools
import math

import jax
import jax.numpy as jnp
from jax import lax
from jax.experimental import pallas as pl
from jax.experimental.pallas import tpu as pltpu


def _round_up(x, m):
    return ((x + m - 1) // m) * m


# --------------------------------------------------------------------------- #
# Path A: table resident in VMEM, one-hot(ids) @ table on the MXU.
# --------------------------------------------------------------------------- #
def _embed_onehot_kernel(ids_ref, table_ref, o_ref, *, vocab, scale):
    """ids_ref: (tile, 1) i32 VMEM; table_ref: (vocab, d_pad) VMEM; o_ref: (tile, d_pad)."""
    ids = ids_ref[...]                                                    # (tile, 1)
    cols = lax.broadcasted_iota(jnp.int32, (ids.shape[0], vocab), 1)      # (tile, vocab)
    one_hot = (cols == ids)
    tbl = table_ref[...]
    if jnp.issubdtype(tbl.dtype, jnp.floating):
        oh = one_hot.astype(tbl.dtype)
    else:
        oh = one_hot.astype(jnp.float32)
        tbl = tbl.astype(jnp.float32)
    acc = jnp.dot(oh, tbl, preferred_element_type=jnp.float32)            # (tile, d_pad)
    o_ref[...] = (acc * jnp.float32(scale)).astype(o_ref.dtype)


# --------------------------------------------------------------------------- #
# Path B: table in HBM, cross-step double-buffered row-gather DMAs.
# --------------------------------------------------------------------------- #
def _embed_gather_kernel(ids_ref, table_ref, o_ref, buf, sems, *,
                         tile_tokens, n_blocks, scale, unroll):
    """
    ids_ref   : (n_pad,) int32 SMEM (scalar-prefetched token ids)
    table_ref : (vocab, d_pad) HBM (pl.ANY)
    o_ref     : (tile_tokens, d_pad) VMEM output block
    buf       : (2, tile_tokens, d_pad) VMEM gather scratch (double buffer)
    sems      : (2, tile_tokens) DMA semaphores
    """
    i = pl.program_id(0)
    cur = i % 2
    nxt = 1 - cur

    def issue_tile(block_idx, slot):
        base = block_idx * tile_tokens

        def body(t, carry):
            row = ids_ref[base + t]
            pltpu.make_async_copy(
                table_ref.at[pl.ds(row, 1), :],
                buf.at[slot, pl.ds(t, 1), :],
                sems.at[slot, t],
            ).start()
            return carry

        lax.fori_loop(0, tile_tokens, body, None, unroll=unroll)

    # Prime the pipeline on the very first step.
    @pl.when(i == 0)
    def _():
        issue_tile(0, 0)

    # Prefetch the *next* tile's rows into the other slot (all ids already in SMEM):
    # the gather of tile i+1 overlaps this step's waits, scale and output writeback.
    @pl.when(i + 1 < n_blocks)
    def _():
        issue_tile(i + 1, nxt)

    # Wait for this step's slot, using descriptors identical to the ones that started it.
    base = i * tile_tokens

    def wait_body(t, carry):
        row = ids_ref[base + t]
        pltpu.make_async_copy(
            table_ref.at[pl.ds(row, 1), :],
            buf.at[cur, pl.ds(t, 1), :],
            sems.at[cur, t],
        ).wait()
        return carry

    lax.fori_loop(0, tile_tokens, wait_body, None, unroll=unroll)

    # One vectorized scale over the whole tile (lane-dense store since d_pad % 128 == 0).
    o_ref[...] = (buf[cur].astype(jnp.float32) * jnp.float32(scale)).astype(o_ref.dtype)


# --------------------------------------------------------------------------- #
# Wrapper
# --------------------------------------------------------------------------- #
def input_embeddings_forward(token_ids, embedding_table, *,
                             tile_tokens=512,
                             vmem_table_budget_bytes=8 << 20,
                             force_hbm_gather=False,
                             vmem_limit_bytes=None):
    """Pallas implementation of InputEmbeddings.forward: embedding(x) * sqrt(d_model)."""
    vocab_size, d_model = embedding_table.shape
    scale = math.sqrt(d_model)
    itemsize = jnp.dtype(embedding_table.dtype).itemsize

    # dtype-aware sublane alignment: f32 -> 8, bf16 -> 16, int8/fp8 -> 32.
    sublane = max(8, 32 // itemsize)

    # Lane-dense output: pad d_model up to a multiple of 128 (pad cols sliced off below).
    d_pad = _round_up(d_model, 128)
    table = embedding_table
    if d_pad != d_model:
        table = jnp.pad(table, ((0, 0), (0, d_pad - d_model)))

    orig_shape = token_ids.shape
    flat_ids = jnp.clip(token_ids.reshape(-1).astype(jnp.int32), 0, vocab_size - 1)
    n = flat_ids.shape[0]

    # Tile size: large default, capped by the (padded) token count, sublane-rounded.
    tile = max(sublane,
               _round_up(min(int(tile_tokens), _round_up(n, sublane)), sublane))
    n_blocks = pl.cdiv(n, tile)
    n_pad = n_blocks * tile
    if n_pad != n:
        flat_ids = jnp.pad(flat_ids, (0, n_pad - n))   # pad with id 0 (a valid row)

    table_bytes = vocab_size * d_pad * itemsize
    out_block_bytes = tile * d_pad * itemsize
    # Fast path only if the table fits the VMEM budget AND the one-hot intermediate
    # stays modest (tile x vocab f32).
    use_vmem_table = ((not force_hbm_gather)
                      and table_bytes <= vmem_table_budget_bytes
                      and tile * vocab_size * 4 <= (4 << 20))

    if vmem_limit_bytes is None:
        if use_vmem_table:
            needed = 2 * out_block_bytes + 2 * table_bytes + 2 * tile * 4
        else:
            needed = 2 * out_block_bytes + 2 * tile * d_pad * itemsize
        # Raise above the per-generation scoped default, stay under v7x physical.
        vmem_limit_bytes = int(min(max(2 * needed + (4 << 20), 32 << 20), 64 << 20))

    out_dtype = embedding_table.dtype

    if use_vmem_table:
        ids2d = flat_ids.reshape(n_pad, 1)
        out = pl.pallas_call(
            functools.partial(_embed_onehot_kernel, vocab=vocab_size, scale=scale),
            out_shape=jax.ShapeDtypeStruct((n_pad, d_pad), out_dtype),
            grid_spec=pltpu.PrefetchScalarGridSpec(
                num_scalar_prefetch=0,
                grid=(n_blocks,),
                in_specs=[
                    pl.BlockSpec((tile, 1), lambda i: (i, 0)),            # token-id tile
                    pl.BlockSpec((vocab_size, d_pad), lambda i: (0, 0)),  # whole table (resident)
                ],
                out_specs=pl.BlockSpec((tile, d_pad), lambda i: (i, 0)),
            ),
            compiler_params=pltpu.CompilerParams(
                dimension_semantics=("parallel",),        # independent tiles -> v7x 2-TC split
                vmem_limit_bytes=vmem_limit_bytes,
            ),
        )(ids2d, table)
    else:
        unroll = min(8, tile)
        out = pl.pallas_call(
            functools.partial(_embed_gather_kernel, tile_tokens=tile,
                              n_blocks=n_blocks, scale=scale, unroll=unroll),
            out_shape=jax.ShapeDtypeStruct((n_pad, d_pad), out_dtype),
            grid_spec=pltpu.PrefetchScalarGridSpec(
                num_scalar_prefetch=1,                    # token ids -> SMEM
                grid=(n_blocks,),
                in_specs=[pl.BlockSpec(memory_space=pl.ANY)],   # table stays in HBM
                out_specs=pl.BlockSpec((tile, d_pad), lambda i, ids: (i, 0)),
                scratch_shapes=[
                    pltpu.VMEM((2, tile, d_pad), table.dtype),  # double-buffered gather
                    pltpu.SemaphoreType.DMA((2, tile)),
                ],
            ),
            # "arbitrary": this path carries DMA state (prefetch of tile i+1) across
            # grid steps, so it must execute sequentially on one core.
            compiler_params=pltpu.CompilerParams(
                dimension_semantics=("arbitrary",),
                vmem_limit_bytes=vmem_limit_bytes,
            ),
        )(flat_ids, table)

    out = out[:n, :d_model]
    return out.reshape(*orig_shape, d_model)


def reference_forward(token_ids, embedding_table):
    # Pure-JAX reference of the torch semantics: embedding lookup * sqrt(d_model).
    d_model = embedding_table.shape[1]
    return jnp.take(embedding_table, token_ids, axis=0) * math.sqrt(d_model)


if __name__ == "__main__":
    key = jax.random.PRNGKey(0)
    k_ids, k_tab = jax.random.split(key)

    B, S = 2, 8
    vocab_size, d_model = 64, 128   # d_model multiple of 128 -> lane-dense stores

    token_ids = jax.random.randint(k_ids, (B, S), 0, vocab_size, dtype=jnp.int32)
    # nn.Embedding default init: N(0, 1)
    table = jax.random.normal(k_tab, (vocab_size, d_model), dtype=jnp.float32)

    ref = reference_forward(token_ids, table)

    # 1) Default dispatch -> VMEM-resident table + one-hot MXU path (single tile).
    out_fast = jax.block_until_ready(input_embeddings_forward(token_ids, table))
    assert out_fast.shape == (B, S, d_model)
    assert jnp.allclose(out_fast, ref, atol=1e-5, rtol=1e-5), "VMEM path mismatch"

    # 2) Same path with a smaller tile so the grid has >1 (parallel) step.
    out_fast2 = jax.block_until_ready(
        input_embeddings_forward(token_ids, table, tile_tokens=8))
    assert jnp.allclose(out_fast2, ref, atol=1e-5, rtol=1e-5), "VMEM tiled path mismatch"

    # 3) Force the HBM gather path (exercises cross-step double-buffered row DMAs).
    out_gather = jax.block_until_ready(
        input_embeddings_forward(token_ids, table, tile_tokens=8, force_hbm_gather=True))
    assert jnp.allclose(out_gather, ref, atol=1e-5, rtol=1e-5), "HBM gather path mismatch"

    print("KERNEL_OK")
</pallas_src>

<mosaic_0001>
module attributes {stable_mosaic.version = 11 : i64} {
  func.func @_embed_onehot_kernel(%arg0: i32, %arg1: memref<16x1xi32, #tpu.memory_space<vmem>>, %arg2: memref<64x128xf32, #tpu.memory_space<vmem>>, %arg3: memref<16x128xf32, #tpu.memory_space<vmem>>) attributes {dimension_semantics = [#tpu.dimension_semantics<parallel>], iteration_bounds = array<i64: 1>, scalar_prefetch = 0 : i64, scratch_operands = 0 : i64, tpu.core_type = #tpu.core_type<tc>, window_params = [{transform_indices = @transform_0, window_bounds = array<i64: 16, 1>}, {pipeline_mode = #tpu.pipeline_mode<synchronous>, transform_indices = @transform_1, window_bounds = array<i64: 64, 128>}, {transform_indices = @transform_2, window_bounds = array<i64: 16, 128>}]} {
    %c0 = arith.constant 0 : index
    %c0_0 = arith.constant 0 : index
    %0 = vector.load %arg1[%c0, %c0_0] : memref<16x1xi32, #tpu.memory_space<vmem>>, vector<16x1xi32>
    %1 = tpu.iota {dimensions = array<i32: 1>} : vector<16x64xi32>
    %2 = vector.broadcast %0 : vector<16x1xi32> to vector<16x64xi32>
    %3 = arith.cmpi eq, %1, %2 : vector<16x64xi32>
    %c0_1 = arith.constant 0 : index
    %c0_2 = arith.constant 0 : index
    %4 = vector.load %arg2[%c0_1, %c0_2] : memref<64x128xf32, #tpu.memory_space<vmem>>, vector<64x128xf32>
    %5 = arith.extui %3 : vector<16x64xi1> to vector<16x64xi32>
    %6 = arith.sitofp %5 : vector<16x64xi32> to vector<16x64xf32>
    %cst = arith.constant dense<0.000000e+00> : vector<16x128xf32>
    %7 = tpu.matmul %6, %4, %cst {dimension_numbers = #tpu.dot_dimension_numbers<[1], [0], [0], [1], [0, 0, 1, 1], [], []>} : vector<16x64xf32>, vector<64x128xf32>, vector<16x128xf32> -> vector<16x128xf32>
    %cst_3 = arith.constant 11.3137083 : f32
    %8 = vector.broadcast %cst_3 : f32 to vector<16x128xf32>
    %9 = arith.mulf %7, %8 : vector<16x128xf32>
    %c0_4 = arith.constant 0 : index
    %c0_5 = arith.constant 0 : index
    %10 = vector.load %arg3[%c0_4, %c0_5] : memref<16x128xf32, #tpu.memory_space<vmem>>, vector<16x128xf32>
    tpu.vector_store %arg3[%c0_4, %c0_5], %9 {strides = array<i32>} : memref<16x128xf32, #tpu.memory_space<vmem>>, vector<16x128xf32>,
    return
  }
  func.func @transform_0(%arg0: i32) -> (i32, i32) {
    %c0_i32 = arith.constant 0 : i32
    %c0_i32_0 = arith.constant 0 : i32
    return %arg0, %c0_i32 : i32, i32
  }
  func.func @transform_1(%arg0: i32) -> (i32, i32) {
    %c0_i32 = arith.constant 0 : i32
    %c0_i32_0 = arith.constant 0 : i32
    %c0_i32_1 = arith.constant 0 : i32
    return %c0_i32, %c0_i32_0 : i32, i32
  }
  func.func @transform_2(%arg0: i32) -> (i32, i32) {
    %c0_i32 = arith.constant 0 : i32
    %c0_i32_0 = arith.constant 0 : i32
    return %arg0, %c0_i32 : i32, i32
  }
}

</mosaic_0001>

<llo_original>
// kernel: tpu_custom_call.1
$region0: #{tpu_custom_call.1}
  #allocation0 [shape = 'u32[]', space=smem, size = 0x4, offset = 0x4, fixed_abs, tag = 'smem constant byte address 0x4 - core index']
  #allocation1 [shape = 'u32[72,128]{1,0:T(1,128)}', space=vmem, size = 0x9000, scoped, tag = 'internal scratch']
  %s0 = inlined_call_operand.vmem [shape: s32[16,1], index: 0, kind: input, shape index: {}]
  %s1 = inlined_call_operand.hbm [shape: f32[64,128], index: 1, kind: input, shape index: {}]
  %s2 = inlined_call_operand.hbm [shape: f32[16,128], index: 2, kind: output, shape index: {}]
  %s3 = sld [smem:[#allocation0]]
  $region22: #{tpu_custom_call.1} parent=0
    _
  %s5 = ssub.s32 1, %s3
  %s6 = scalar_select 0, %s5, %s3
  $region1: #{tpu_custom_call.1} parent=0
    #allocation2 [shape = 'u8[32768]{0}', space=vmem, size = 0x8000, scoped, tag = 'input window, operand 1, single buffered']
    #allocation3 [shape = 's32[1]{0}', space=sflag, size = 0x4, scoped, tag = 'scoped memory for tpu_custom_call.1']
    #allocation4 [shape = 's32[1]{0}', space=sflag, size = 0x4, scoped, tag = 'scoped memory for tpu_custom_call.1']
    #allocation5 [shape = 'u8[8192]{0}', space=vmem, size = 0x2000, scoped, tag = 'output window, operand 0, single buffered']
    %7 = vsyncpa [#allocation3], 0
    %8 = vsyncpa [#allocation4], 0
    // Predicated region
    $region2: #{tpu_custom_call.1} parent=1 // pred_check
      _
    $region3: #{tpu_custom_call.1} parent=1 // pred_check_branch
      %10 = sbr.rel (0) target = $region5
    $region4: #{tpu_custom_call.1} parent=1 // pred_region
      _
    $region5: #{tpu_custom_call.1} parent=1 // pred_fallthru
      _
    // Predicated region
    $region6: #{tpu_custom_call.1} parent=1 // pred_check
      _
    $region7: #{tpu_custom_call.1} parent=1 // pred_check_branch
      %12 = sbr.rel (0) target = $region9
    $region8: #{tpu_custom_call.1} parent=1 // pred_region
      %14 = vsyncadd [#allocation3], 0
      %s15 = sshll.u32 %s1, 4
      %s16 = int_to_ptr.hbm [resolvable:$true] %s15
      %s17 = sshll.u32 [#allocation2], 4
      %s18 = int_to_ptr.vmem [resolvable:$true] %s17
      %23 = dma.hbm_to_vmem [thread:$0]  %s16, 1024, %s18, [#allocation3], 128, 128, 8
    $region9: #{tpu_custom_call.1} parent=1 // pred_fallthru
      _
    // Predicated region
    $region10: #{tpu_custom_call.1} parent=1 // pred_check
      _
    $region11: #{tpu_custom_call.1} parent=1 // pred_check_branch
      %25 = sbr.rel (0) target = $region13
    $region12: #{tpu_custom_call.1} parent=1 // pred_region
      %27 = dma.done [#allocation3], 1024
    $region13: #{tpu_custom_call.1} parent=1 // pred_fallthru
      _
    %v28 = vld [vmem:[%s0] sm:$0xff]
    %v29 = vld [vmem:[%s0 + $0x8] sm:$0xff]
    %v30 = vlaneseq
    %v31 = vand.u32 %v30, 127
    %32 = vset.pattern.permute.xlu0 0
    %33 = vperm.xlu0 %32, %v28
    %v34 = vpop.permute.xlu0 %33
    %35 = vset.pattern.permute.xlu0 0
    %36 = vperm.xlu0 %35, %v29
    %v37 = vpop.permute.xlu0 %36
    %vm38 = vcmp.eq.s32.totalorder %v31, %v34
    %vm39 = vcmp.eq.s32.totalorder %v31, %v37
    %v40 = vld [vmem:[#allocation2] sm:$0xff]
    %v41 = vld [vmem:[#allocation2 + $0x8] sm:$0xff]
    %v42 = vld [vmem:[#allocation2 + $0x10] sm:$0xff]
    %v43 = vld [vmem:[#allocation2 + $0x18] sm:$0xff]
    %v44 = vld [vmem:[#allocation2 + $0x20] sm:$0xff]
    %v45 = vld [vmem:[#allocation2 + $0x28] sm:$0xff]
    %v46 = vld [vmem:[#allocation2 + $0x30] sm:$0xff]
    %v47 = vld [vmem:[#allocation2 + $0x38] sm:$0xff]
    %v48 = vsel %vm38, 1, 0
    %v49 = vsel %vm39, 1, 0
    %v50 = vcvt.s32.f32 %v48
    %v51 = vcvt.s32.f32 %v49
    %vm52 = vcmask 523264
    %v54 = vsel %vm52, %v50, 0
    %v57 = vsel %vm52, %v51, 0
    %59 = vmatpush.msra.mxu0 0.0
    %60 = vmatpush.msra.mxu0 0.0
    %61 = vmatpush.msra.mxu0 0.0
    %62 = vmatpush.msra.mxu0 0.0
    %63 = vmatpush.msra.mxu0 0.0
    %64 = vmatpush.msra.mxu0 0.0
    %65 = vmatpush.msra.mxu0 0.0
    %66 = vmatpush.msra.mxu0 0.0
    %67 = vmatpush.msra.mxu0 %v47
    %68 = vmatpush.msra.mxu0 %v46
    %69 = vmatpush.msra.mxu0 %v45
    %70 = vmatpush.msra.mxu0 %v44
    %71 = vmatpush.msra.mxu0 %v43
    %72 = vmatpush.msra.mxu0 %v42
    %73 = vmatpush.msra.mxu0 %v41
    %74 = vmatpush.msra.mxu0 %v40
    %75 = vmatmul.f32.gmra.mxu0 %v54
    %v76 = vpop.f32.mrf.mxu0
    %v77 = vadd.f32 0.0, %v76
    %78 = vmatmul.f32.gmra.mxu0 %v57
    %v79 = vpop.f32.mrf.mxu0
    %v80 = vadd.f32 0.0, %v79
    %81 = vdwg.mxu0
    %v82 = vmul.f32 %v77, 11.313708
    %v83 = vmul.f32 %v80, 11.313708
    %84 = vst [vmem:[#allocation5] sm:$0xff] %v82
    %85 = vst [vmem:[#allocation5 + $0x8] sm:$0xff] %v83
    // Predicated region
    $region14: #{tpu_custom_call.1} parent=1 // pred_check
      _
    $region15: #{tpu_custom_call.1} parent=1 // pred_check_branch
      %87 = sbr.rel (0) target = $region17
    $region16: #{tpu_custom_call.1} parent=1 // pred_region
      %89 = vsyncadd [#allocation4], 0
      %s90 = sshll.u32 [#allocation5], 4
      %s91 = int_to_ptr.vmem [resolvable:$true] %s90
      %s92 = sshll.u32 %s2, 4
      %s93 = int_to_ptr.hbm [resolvable:$true] %s92
      %98 = dma.vmem_to_hbm [thread:$0]  %s91, 256, %s93, [#allocation4], 128, 128, 8
    $region17: #{tpu_custom_call.1} parent=1 // pred_fallthru
      _
    // Predicated region
    $region18: #{tpu_custom_call.1} parent=1 // pred_check
      _
    $region19: #{tpu_custom_call.1} parent=1 // pred_check_branch
      %100 = sbr.rel (0) target = $region21
    $region20: #{tpu_custom_call.1} parent=1 // pred_region
      %102 = dma.done [#allocation4], 256
    $region21: #{tpu_custom_call.1} parent=1 // pred_fallthru
      _
    %103 = vsyncpa [#allocation3], 1
    %104 = vsyncpa [#allocation4], 1

</llo_original>
